<compile_context>
chip_gen: v7x
topology: tpu7x:2x2x1
jax: 0.10.0
libtpu: 0.0.40
codegen_flags: <defaults>
</compile_context>

<pallas_src>
import math

import jax
import jax.numpy as jnp
from jax.experimental import pallas as pl
from jax.experimental.pallas import tpu as pltpu

# Lane widths we try (all multiples of 128 -> full-width unmasked vld/vst).
_LANE_CANDIDATES = (2048, 1024, 512, 256, 128)
_DEFAULT_LANES = 512
# Per-tile byte budget.  2 MiB double-buffered on input and output = 8 MiB,
# comfortably inside v5e's 16 MiB scoped-VMEM default (and v6e/v7x's 32 MiB).
_MAX_TILE_BYTES = 2 * 1024 * 1024


def _h_swish_kernel(x_ref, o_ref):
    x = x_ref[...]
    # h_sigmoid(x) = relu6(x + 3) / 6 ; h_swish(x) = x * h_sigmoid(x).
    # Plain division for bit parity with torch.nn.Hardswish; the kernel is
    # HBM-bound so the extra per-vreg math is free filler.
    o_ref[...] = (x * (jnp.clip(x + 3.0, 0.0, 6.0) / 6.0)).astype(o_ref.dtype)


def _h_swish_jnp(x):
    return x * (jnp.clip(x + 3.0, 0.0, 6.0) / 6.0)


def _sublane_multiple(dtype) -> int:
    """Native sublane packing for the dtype (f32: 8, bf16: 16, int8/fp8: 32)."""
    itemsize = jnp.dtype(dtype).itemsize
    if itemsize >= 4:
        return 8
    if itemsize == 2:
        return 16
    return 32


def _round_up(a: int, b: int) -> int:
    return ((a + b - 1) // b) * b


def _pick_tile_rows(rows: int, lanes: int, dtype) -> int:
    sub = _sublane_multiple(dtype)
    itemsize = jnp.dtype(dtype).itemsize
    # Byte-budget cap, rounded down to the native sublane packing.
    cap = max(sub, (_MAX_TILE_BYTES // (lanes * itemsize)) // sub * sub)
    if rows <= sub:
        # Single block whose row dim equals the full array dim (always legal).
        return rows
    # Aim for >= 2 grid blocks so the single "parallel" grid axis gives v7x's
    # two TensorCores work; a partial edge block is simply store-masked.
    half = _round_up(-(-rows // 2), sub)
    return max(sub, min(cap, half))


def _h_swish_2d(x2d):
    rows, lanes = x2d.shape
    tile_rows = _pick_tile_rows(rows, lanes, x2d.dtype)
    grid = (pl.cdiv(rows, tile_rows),)
    return pl.pallas_call(
        _h_swish_kernel,
        out_shape=jax.ShapeDtypeStruct((rows, lanes), x2d.dtype),
        grid=grid,
        in_specs=[pl.BlockSpec((tile_rows, lanes), lambda i: (i, 0))],
        out_specs=pl.BlockSpec((tile_rows, lanes), lambda i: (i, 0)),
        compiler_params=pltpu.CompilerParams(
            dimension_semantics=("parallel",),
        ),
    )(x2d)


def h_swish(x):
    """Elementwise h_swish for any-rank arrays (e.g. NCHW activations)."""
    orig_shape = x.shape
    total = math.prod(orig_shape)
    if total == 0:
        return x  # empty tensor: nothing to do

    x_flat = x.reshape(total)  # row-major flatten: free (no data movement)

    # Fast path: widest lane count that divides the element count, so the
    # (rows, lanes) view is a zero-copy reshape (no pad, no output slice).
    lanes = next((c for c in _LANE_CANDIDATES if total % c == 0), None)
    if lanes is not None:
        rows = total // lanes
        out_flat = _h_swish_2d(x_flat.reshape(rows, lanes)).reshape(total)
        return out_flat.reshape(orig_shape)

    # Unaligned tail (element count not a multiple of 128, rare): stream the
    # bulk through the lane-dense kernel, finish the tail in plain jnp.
    lanes = _DEFAULT_LANES
    rows = total // lanes
    if rows == 0:
        return _h_swish_jnp(x)  # tiny tensor: one fused elementwise pass
    bulk = rows * lanes
    bulk_out = _h_swish_2d(x_flat[:bulk].reshape(rows, lanes)).reshape(bulk)
    tail_out = _h_swish_jnp(x_flat[bulk:])
    return jnp.concatenate([bulk_out, tail_out]).reshape(orig_shape)


if __name__ == "__main__":
    key = jax.random.PRNGKey(0)
    # NCHW input, same axis convention as the PyTorch module.
    x = jax.random.normal(key, (2, 4, 16, 16), dtype=jnp.float32) * 4.0
    out = jax.block_until_ready(h_swish(x))

    ref = x * (jnp.clip(x + 3.0, 0.0, 6.0) / 6.0)
    assert out.shape == x.shape
    assert out.dtype == x.dtype
    assert jnp.allclose(out, ref, atol=1e-6), "f32 mismatch vs reference"

    # bf16 stays bf16 end-to-end.
    xb = (jax.random.normal(jax.random.PRNGKey(1), (2, 4, 16, 16),
                            dtype=jnp.bfloat16) * 4.0)
    outb = jax.block_until_ready(h_swish(xb))
    refb = xb * (jnp.clip(xb + 3.0, 0.0, 6.0) / 6.0)
    assert outb.dtype == jnp.bfloat16
    assert jnp.allclose(outb.astype(jnp.float32), refb.astype(jnp.float32),
                        atol=1e-2), "bf16 mismatch vs reference"

    # Unaligned element count (3*5*7*11 = 1155): Pallas bulk + jnp tail path.
    xo = (jax.random.normal(jax.random.PRNGKey(2), (3, 5, 7, 11),
                            dtype=jnp.float32) * 4.0)
    outo = jax.block_until_ready(h_swish(xo))
    refo = xo * (jnp.clip(xo + 3.0, 0.0, 6.0) / 6.0)
    assert outo.shape == xo.shape
    assert jnp.allclose(outo, refo, atol=1e-6), "unaligned mismatch vs reference"

    print("KERNEL_OK")
</pallas_src>

<mosaic_0001>
module attributes {stable_mosaic.version = 11 : i64} {
  func.func @_h_swish_kernel(%arg0: i32, %arg1: memref<1x2048xf32, #tpu.memory_space<vmem>>, %arg2: memref<1x2048xf32, #tpu.memory_space<vmem>>) attributes {dimension_semantics = [#tpu.dimension_semantics<parallel>], iteration_bounds = array<i64: 1>, scalar_prefetch = 0 : i64, scratch_operands = 0 : i64, tpu.core_type = #tpu.core_type<tc>, window_params = [{transform_indices = @transform_0, window_bounds = array<i64: 1, 2048>}, {transform_indices = @transform_1, window_bounds = array<i64: 1, 2048>}]} {
    %c0 = arith.constant 0 : index
    %c0_0 = arith.constant 0 : index
    %0 = vector.load %arg1[%c0, %c0_0] : memref<1x2048xf32, #tpu.memory_space<vmem>>, vector<1x2048xf32>
    %cst = arith.constant 3.000000e+00 : f32
    %1 = vector.broadcast %cst : f32 to vector<1x2048xf32>
    %2 = arith.addf %0, %1 : vector<1x2048xf32>
    %cst_1 = arith.constant 0.000000e+00 : f32
    %cst_2 = arith.constant 6.000000e+00 : f32
    %3 = vector.broadcast %cst_1 : f32 to vector<1x2048xf32>
    %4 = arith.maximumf %3, %2 : vector<1x2048xf32>
    %5 = vector.broadcast %cst_2 : f32 to vector<1x2048xf32>
    %6 = arith.minimumf %5, %4 : vector<1x2048xf32>
    %cst_3 = arith.constant 6.000000e+00 : f32
    %7 = vector.broadcast %cst_3 : f32 to vector<1x2048xf32>
    %8 = arith.divf %6, %7 : vector<1x2048xf32>
    %9 = arith.mulf %0, %8 : vector<1x2048xf32>
    %c0_4 = arith.constant 0 : index
    %c0_5 = arith.constant 0 : index
    %10 = vector.load %arg2[%c0_4, %c0_5] : memref<1x2048xf32, #tpu.memory_space<vmem>>, vector<1x2048xf32>
    tpu.vector_store %arg2[%c0_4, %c0_5], %9 {strides = array<i32>} : memref<1x2048xf32, #tpu.memory_space<vmem>>, vector<1x2048xf32>,
    return
  }
  func.func @transform_0(%arg0: i32) -> (i32, i32) {
    %c0_i32 = arith.constant 0 : i32
    %c0_i32_0 = arith.constant 0 : i32
    return %arg0, %c0_i32 : i32, i32
  }
  func.func @transform_1(%arg0: i32) -> (i32, i32) {
    %c0_i32 = arith.constant 0 : i32
    %c0_i32_0 = arith.constant 0 : i32
    return %arg0, %c0_i32 : i32, i32
  }
}

</mosaic_0001>

<llo_original>
// kernel: tpu_custom_call.1
$region0: #{tpu_custom_call.1}
  #allocation0 [shape = 'u32[]', space=smem, size = 0x4, offset = 0x4, fixed_abs, tag = 'smem constant byte address 0x4 - core index']
  #allocation1 [shape = 'u32[144,128]{1,0:T(1,128)}', space=vmem, size = 0x12000, scoped, tag = 'internal scratch']
  %s0 = inlined_call_operand.hbm [shape: f32[1,2048], index: 0, kind: input, shape index: {}]
  %s1 = inlined_call_operand.hbm [shape: f32[1,2048], index: 1, kind: output, shape index: {}]
  %s2 = sld [smem:[#allocation0]]
  $region18: #{tpu_custom_call.1} parent=0
    _
  %s4 = ssub.s32 1, %s2
  %s5 = scalar_select 0, %s4, %s2
  $region1: #{tpu_custom_call.1} parent=0
    #allocation2 [shape = 'u8[8192]{0}', space=vmem, size = 0x2000, scoped, tag = 'input window, operand 0, single buffered']
    #allocation3 [shape = 's32[1]{0}', space=sflag, size = 0x4, scoped, tag = 'scoped memory for tpu_custom_call.1']
    #allocation4 [shape = 's32[1]{0}', space=sflag, size = 0x4, scoped, tag = 'scoped memory for tpu_custom_call.1']
    #allocation5 [shape = 'u8[8192]{0}', space=vmem, size = 0x2000, scoped, tag = 'output window, operand 0, single buffered']
    %6 = vsyncpa [#allocation3], 0
    %7 = vsyncpa [#allocation4], 0
    // Predicated region
    $region2: #{tpu_custom_call.1} parent=1 // pred_check
      _
    $region3: #{tpu_custom_call.1} parent=1 // pred_check_branch
      %9 = sbr.rel (0) target = $region5
    $region4: #{tpu_custom_call.1} parent=1 // pred_region
      %s11 = ssub.s32 256, 256
      %12 = vsyncadd [#allocation3], %s11
      %s14 = sshll.u32 [#allocation2], 4
      %s15 = int_to_ptr.vmem [resolvable:$true] %s14
      %17 = dma.hbm_to_vmem [thread:$0]  %s0, 256, %s15, [#allocation3]
    $region5: #{tpu_custom_call.1} parent=1 // pred_fallthru
      _
    // Predicated region
    $region6: #{tpu_custom_call.1} parent=1 // pred_check
      _
    $region7: #{tpu_custom_call.1} parent=1 // pred_check_branch
      %19 = sbr.rel (0) target = $region9
    $region8: #{tpu_custom_call.1} parent=1 // pred_region
      %20 = dma.done [#allocation3], 256
    $region9: #{tpu_custom_call.1} parent=1 // pred_fallthru
      _
    %v21 = vld [vmem:[#allocation2] sm:$0xff]
    %v22 = vld [vmem:[#allocation2 + $0x8] sm:$0xff]
    %v23 = vadd.f32 %v21, 3.0
    %v24 = vadd.f32 %v22, 3.0
    %v25 = vmax.f32 %v23, 0.0
    %v26 = vmax.f32 %v24, 0.0
    %v27 = vmin.f32 %v25, 6.0
    %v28 = vmin.f32 %v26, 6.0
    %v29 = vrcp.pop 6.0
    %v30 = vmul.f32 %v27, %v29
    %v31 = vmul.f32 %v28, %v29
    %v32 = vmul.f32 %v21, %v30
    %v33 = vmul.f32 %v22, %v31
    %34 = vst [vmem:[#allocation5] sm:$0xff] %v32
    %35 = vst [vmem:[#allocation5 + $0x8] sm:$0xff] %v33
    // Predicated region
    $region10: #{tpu_custom_call.1} parent=1 // pred_check
      _
    $region11: #{tpu_custom_call.1} parent=1 // pred_check_branch
      %37 = sbr.rel (0) target = $region13
    $region12: #{tpu_custom_call.1} parent=1 // pred_region
      %s39 = ssub.s32 256, 256
      %40 = vsyncadd [#allocation4], %s39
      %s42 = sshll.u32 [#allocation5], 4
      %s43 = int_to_ptr.vmem [resolvable:$true] %s42
      %45 = dma.vmem_to_hbm [thread:$0]  %s43, 256, %s1, [#allocation4]
    $region13: #{tpu_custom_call.1} parent=1 // pred_fallthru
      _
    // Predicated region
    $region14: #{tpu_custom_call.1} parent=1 // pred_check
      _
    $region15: #{tpu_custom_call.1} parent=1 // pred_check_branch
      %47 = sbr.rel (0) target = $region17
    $region16: #{tpu_custom_call.1} parent=1 // pred_region
      %48 = dma.done [#allocation4], 256
    $region17: #{tpu_custom_call.1} parent=1 // pred_fallthru
      _
    %49 = vsyncpa [#allocation3], 1
    %50 = vsyncpa [#allocation4], 1

</llo_original>
